<compile_context>
chip_gen: v6e
topology: v6e:2x2x1
jax: 0.10.0
libtpu: 0.0.40
codegen_flags: <defaults>
</compile_context>

<pallas_src>
import functools

import numpy as np
import jax
import jax.numpy as jnp
from jax.experimental import pallas as pl
from jax.experimental.pallas import tpu as pltpu


def _round_up(x, m):
    return (x + m - 1) // m * m


# ---------------------------------------------------------------------------
# Kernel
# ---------------------------------------------------------------------------
def _mlp_kernel(n_layers, x_ref, w_ref, o_ref):
    """Fused MLP chain on one (TM, D) batch tile.

    x_ref: (TM, D)     padded activations; carrier column already set to 1
    w_ref: (L, D, D)   packed weights (bias folded into row `in_dim`,
                       carrier propagated via a 1 at [in_dim, out_dim])
    o_ref: (TM, D)     lane-dense output slab (valid columns: [:feature_dim])
    """
    h = x_ref[...]                       # stays in the MXU/storage dtype
    for l in range(n_layers):
        acc = jnp.dot(h, w_ref[l], preferred_element_type=jnp.float32)
        if l < n_layers - 1:
            # ReLU epilogue in f32 (v5e VPU has no bf16), back to MXU dtype.
            h = jnp.maximum(acc, 0.0).astype(w_ref.dtype)
        else:
            o_ref[...] = acc.astype(o_ref.dtype)


# ---------------------------------------------------------------------------
# Parameters: nn.Linear-equivalent init + lane-dense packing
# ---------------------------------------------------------------------------
def init_mlp_encoder_params(key, state_dim, layer_dim, feature_dim,
                            dtype=jnp.float32):
    """Flat list [W1, b1, W2, b2, ..., W_out]; W_k is (in, out), b_k is (1, out)."""
    params = []
    dims = [state_dim] + list(layer_dim)
    for i in range(len(layer_dim)):
        fan_in, fan_out = dims[i], dims[i + 1]
        key, kw, kb = jax.random.split(key, 3)
        bound = 1.0 / float(np.sqrt(fan_in))
        w = jax.random.uniform(kw, (fan_in, fan_out), dtype, -bound, bound)
        b = jax.random.uniform(kb, (1, fan_out), dtype, -bound, bound)
        params += [w, b]
    fan_in = layer_dim[-1]
    key, kw = jax.random.split(key)
    bound = 1.0 / float(np.sqrt(fan_in))
    w_out = jax.random.uniform(kw, (fan_in, feature_dim), dtype, -bound, bound)
    params.append(w_out)
    return params


def pack_mlp_encoder_params(params, state_dim, layer_dim, feature_dim,
                            dtype=jnp.float32):
    """Pack [W1,b1,...,W_out] into one (n_layers, D, D) lane-dense tensor.

    Bias b_k is folded into row dims[k] of W_k; a 1.0 at [dims[k], dims[k+1]]
    propagates the ones-carrier column through ReLU.  The final (bias-free)
    projection has a zero carrier row, so it contributes nothing.
    """
    dims = [state_dim] + list(layer_dim)
    n_hidden = len(layer_dim)
    n_layers = n_hidden + 1
    d_pad = max([_round_up(d + 1, 128) for d in dims]
                + [_round_up(feature_dim, 128)])

    packed = np.zeros((n_layers, d_pad, d_pad), np.float32)
    for l in range(n_hidden):
        fin, fout = dims[l], dims[l + 1]
        packed[l, :fin, :fout] = np.asarray(params[2 * l], np.float32)
        packed[l, fin, :fout] = np.asarray(params[2 * l + 1], np.float32).reshape(-1)
        packed[l, fin, fout] = 1.0            # ones-carrier propagation
    packed[n_hidden, :dims[-1], :feature_dim] = np.asarray(params[-1], np.float32)
    return jnp.asarray(packed, dtype)


# ---------------------------------------------------------------------------
# Forward wrapper
# ---------------------------------------------------------------------------
@functools.partial(jax.jit, static_argnames=("feature_dim",))
def mlp_encoder_forward(x, packed_w, *, feature_dim):
    """Run the fused MLPEncoder Pallas kernel.

    x:        (batch, state_dim)
    packed_w: (n_layers, D, D) from pack_mlp_encoder_params (f32 or bf16)
    """
    batch, state_dim = x.shape
    n_layers, d_pad, _ = packed_w.shape
    compute_dtype = packed_w.dtype

    # Batch tile: multiple of 8 sublanes; 256 rows per step once batch is big.
    tm = min(256, _round_up(batch, 8))
    b_pad = _round_up(batch, tm)
    grid = (b_pad // tm,)

    # Lane-dense, carrier-augmented input slab.
    x_pad = jnp.zeros((b_pad, d_pad), compute_dtype)
    x_pad = x_pad.at[:batch, :state_dim].set(x.astype(compute_dtype))
    x_pad = x_pad.at[:, state_dim].set(jnp.asarray(1.0, compute_dtype))

    # Explicit VMEM budget: double-buffered x/out tiles + resident weights,
    # with headroom; capped at 64 MiB so it is valid on v7x as well.
    w_itemsize = jnp.dtype(compute_dtype).itemsize
    o_itemsize = jnp.dtype(x.dtype).itemsize
    needed = (2 * n_layers * d_pad * d_pad * w_itemsize
              + 2 * tm * d_pad * w_itemsize
              + 2 * tm * d_pad * o_itemsize)
    vmem_limit = int(min(max(4 * needed, 16 * 2**20), 64 * 2**20))

    out_pad = pl.pallas_call(
        functools.partial(_mlp_kernel, n_layers),
        out_shape=jax.ShapeDtypeStruct((b_pad, d_pad), x.dtype),
        grid_spec=pltpu.PrefetchScalarGridSpec(
            num_scalar_prefetch=0,
            grid=grid,
            in_specs=[
                # activations stream per batch tile
                pl.BlockSpec((tm, d_pad), lambda i: (i, 0)),
                # packed weights: single operand, constant index_map (resident)
                pl.BlockSpec((n_layers, d_pad, d_pad), lambda i: (0, 0, 0)),
            ],
            out_specs=pl.BlockSpec((tm, d_pad), lambda i: (i, 0)),
        ),
        compiler_params=pltpu.CompilerParams(
            dimension_semantics=("parallel",),   # megacore-shard batch on v7x
            vmem_limit_bytes=vmem_limit,
        ),
    )(x_pad, packed_w)

    return out_pad[:batch, :feature_dim]


# ---------------------------------------------------------------------------
# Pure-JAX reference (PyTorch semantics)
# ---------------------------------------------------------------------------
def mlp_encoder_reference(x, params, n_hidden):
    h = x.astype(jnp.float32)
    for i in range(n_hidden):
        w, b = params[2 * i], params[2 * i + 1]
        h = jnp.maximum(h @ w + b, 0.0)
    return (h @ params[-1]).astype(x.dtype)


if __name__ == "__main__":
    # Module configuration (small, consistent with MLPEncoder's forward).
    state_dim = 16
    layer_dim = [32, 32]
    feature_dim = 8
    batch = 4
    n_hidden = len(layer_dim)

    key = jax.random.PRNGKey(0)
    key, kx = jax.random.split(key)
    x = jax.random.normal(kx, (batch, state_dim), jnp.float32)
    params = init_mlp_encoder_params(key, state_dim, layer_dim, feature_dim)
    ref = mlp_encoder_reference(x, params, n_hidden)

    # f32 storage path (exact vs reference; recommended on v5e).
    packed_f32 = pack_mlp_encoder_params(params, state_dim, layer_dim,
                                         feature_dim, jnp.float32)
    out_f32 = jax.block_until_ready(
        mlp_encoder_forward(x, packed_f32, feature_dim=feature_dim))
    assert out_f32.shape == (batch, feature_dim), out_f32.shape
    assert jnp.allclose(out_f32, ref, atol=1e-5, rtol=1e-5), "f32 mismatch"

    # bf16 storage path (halves HBM/VMEM bytes; bf16 MXU peak on v6e/v7x,
    # f32 accumulate + f32 ReLU kept for accuracy / v5e VPU).
    # TODO(synk): if this encoder is later quantized, use fp8 (not int8) on v7x.
    packed_bf16 = pack_mlp_encoder_params(params, state_dim, layer_dim,
                                          feature_dim, jnp.bfloat16)
    out_bf16 = jax.block_until_ready(
        mlp_encoder_forward(x, packed_bf16, feature_dim=feature_dim))
    assert out_bf16.shape == (batch, feature_dim), out_bf16.shape
    assert jnp.allclose(out_bf16, ref, atol=5e-2, rtol=5e-2), "bf16 mismatch"

    print("KERNEL_OK")
</pallas_src>

<mosaic_0001>
module attributes {stable_mosaic.version = 11 : i64} {
  func.func @_mlp_kernel(%arg0: i32, %arg1: memref<8x128xf32, #tpu.memory_space<vmem>>, %arg2: memref<3x128x128xf32, #tpu.memory_space<vmem>>, %arg3: memref<8x128xf32, #tpu.memory_space<vmem>>) attributes {dimension_semantics = [#tpu.dimension_semantics<parallel>], iteration_bounds = array<i64: 1>, scalar_prefetch = 0 : i64, scratch_operands = 0 : i64, tpu.core_type = #tpu.core_type<tc>, window_params = [{transform_indices = @transform_0, window_bounds = array<i64: 8, 128>}, {pipeline_mode = #tpu.pipeline_mode<synchronous>, transform_indices = @transform_1, window_bounds = array<i64: 3, 128, 128>}, {transform_indices = @transform_2, window_bounds = array<i64: 8, 128>}]} {
    %c0 = arith.constant 0 : index
    %c0_0 = arith.constant 0 : index
    %0 = vector.load %arg1[%c0, %c0_0] : memref<8x128xf32, #tpu.memory_space<vmem>>, vector<8x128xf32>
    %c0_1 = arith.constant 0 : index
    %c0_2 = arith.constant 0 : index
    %c0_3 = arith.constant 0 : index
    %1 = vector.load %arg2[%c0_1, %c0_2, %c0_3] : memref<3x128x128xf32, #tpu.memory_space<vmem>>, vector<1x128x128xf32>
    %2 = vector.shape_cast %1 : vector<1x128x128xf32> to vector<128x128xf32>
    %cst = arith.constant dense<0.000000e+00> : vector<8x128xf32>
    %3 = tpu.matmul %0, %2, %cst {dimension_numbers = #tpu.dot_dimension_numbers<[1], [0], [0], [1], [0, 0, 1, 1], [], []>} : vector<8x128xf32>, vector<128x128xf32>, vector<8x128xf32> -> vector<8x128xf32>
    %cst_4 = arith.constant 0.000000e+00 : f32
    %4 = vector.broadcast %cst_4 : f32 to vector<8x128xf32>
    %5 = arith.maximumf %3, %4 : vector<8x128xf32>
    %c1 = arith.constant 1 : index
    %c0_5 = arith.constant 0 : index
    %c0_6 = arith.constant 0 : index
    %6 = vector.load %arg2[%c1, %c0_5, %c0_6] : memref<3x128x128xf32, #tpu.memory_space<vmem>>, vector<1x128x128xf32>
    %7 = vector.shape_cast %6 : vector<1x128x128xf32> to vector<128x128xf32>
    %cst_7 = arith.constant dense<0.000000e+00> : vector<8x128xf32>
    %8 = tpu.matmul %5, %7, %cst_7 {dimension_numbers = #tpu.dot_dimension_numbers<[1], [0], [0], [1], [0, 0, 1, 1], [], []>} : vector<8x128xf32>, vector<128x128xf32>, vector<8x128xf32> -> vector<8x128xf32>
    %cst_8 = arith.constant 0.000000e+00 : f32
    %9 = vector.broadcast %cst_8 : f32 to vector<8x128xf32>
    %10 = arith.maximumf %8, %9 : vector<8x128xf32>
    %c2 = arith.constant 2 : index
    %c0_9 = arith.constant 0 : index
    %c0_10 = arith.constant 0 : index
    %11 = vector.load %arg2[%c2, %c0_9, %c0_10] : memref<3x128x128xf32, #tpu.memory_space<vmem>>, vector<1x128x128xf32>
    %12 = vector.shape_cast %11 : vector<1x128x128xf32> to vector<128x128xf32>
    %cst_11 = arith.constant dense<0.000000e+00> : vector<8x128xf32>
    %13 = tpu.matmul %10, %12, %cst_11 {dimension_numbers = #tpu.dot_dimension_numbers<[1], [0], [0], [1], [0, 0, 1, 1], [], []>} : vector<8x128xf32>, vector<128x128xf32>, vector<8x128xf32> -> vector<8x128xf32>
    %c0_12 = arith.constant 0 : index
    %c0_13 = arith.constant 0 : index
    %14 = vector.load %arg3[%c0_12, %c0_13] : memref<8x128xf32, #tpu.memory_space<vmem>>, vector<8x128xf32>
    tpu.vector_store %arg3[%c0_12, %c0_13], %13 {strides = array<i32>} : memref<8x128xf32, #tpu.memory_space<vmem>>, vector<8x128xf32>,
    return
  }
  func.func @transform_0(%arg0: i32) -> (i32, i32) {
    %c0_i32 = arith.constant 0 : i32
    %c0_i32_0 = arith.constant 0 : i32
    return %arg0, %c0_i32 : i32, i32
  }
  func.func @transform_1(%arg0: i32) -> (i32, i32, i32) {
    %c0_i32 = arith.constant 0 : i32
    %c0_i32_0 = arith.constant 0 : i32
    %c0_i32_1 = arith.constant 0 : i32
    %c0_i32_2 = arith.constant 0 : i32
    return %c0_i32, %c0_i32_0, %c0_i32_1 : i32, i32, i32
  }
  func.func @transform_2(%arg0: i32) -> (i32, i32) {
    %c0_i32 = arith.constant 0 : i32
    %c0_i32_0 = arith.constant 0 : i32
    return %arg0, %c0_i32 : i32, i32
  }
}

</mosaic_0001>

<llo_original>
// kernel: mlp_encoder_forward.1
$region0: #{mlp_encoder_forward.1}
  #allocation0 [shape = 'u32[]', space=smem, size = 0x4, offset = 0x4, fixed_abs, tag = 'smem constant byte address 0x4 - core index']
  #allocation1 [shape = 'u32[144,128]{1,0:T(1,128)}', space=vmem, size = 0x12000, scoped, tag = 'internal scratch']
  %s0 = inlined_call_operand.vmem [shape: f32[8,128], index: 0, kind: input, shape index: {}]
  %s1 = inlined_call_operand.hbm [shape: f32[3,128,128], index: 1, kind: input, shape index: {}]
  %s2 = inlined_call_operand.vmem [shape: f32[8,128], index: 2, kind: output, shape index: {}]
  %s3 = sld [smem:[#allocation0]]
  $region22: #{mlp_encoder_forward.1} parent=0
    _
  %s5 = ssub.s32 1, %s3
  %s6 = scalar_select 0, %s5, %s3
  $region1: #{mlp_encoder_forward.1} parent=0
    #allocation2 [shape = 'u8[196608]{0}', space=vmem, size = 0x30000, scoped, tag = 'input window, operand 1, single buffered']
    #allocation3 [shape = 's32[1]{0}', space=sflag, size = 0x4, scoped, tag = 'scoped memory for mlp_encoder_forward.1']
    %7 = vsyncpa [#allocation3], 0
    // Predicated region
    $region2: #{mlp_encoder_forward.1} parent=1 // pred_check
      _
    $region3: #{mlp_encoder_forward.1} parent=1 // pred_check_branch
      %9 = sbr.rel (0) target = $region5
    $region4: #{mlp_encoder_forward.1} parent=1 // pred_region
      _
    $region5: #{mlp_encoder_forward.1} parent=1 // pred_fallthru
      _
    // Predicated region
    $region6: #{mlp_encoder_forward.1} parent=1 // pred_check
      _
    $region7: #{mlp_encoder_forward.1} parent=1 // pred_check_branch
      %11 = sbr.rel (0) target = $region9
    $region8: #{mlp_encoder_forward.1} parent=1 // pred_region
      %s13 = ssub.s32 6144, 6144
      %14 = vsyncadd [#allocation3], %s13
      %s15 = sshll.u32 [#allocation2], 4
      %s16 = int_to_ptr.vmem [resolvable:$true] %s15
      %21 = dma.hbm_to_vmem [thread:$0]  %s1, 6144, %s16, [#allocation3], 128, 128, 8
    $region9: #{mlp_encoder_forward.1} parent=1 // pred_fallthru
      _
    // Predicated region
    $region10: #{mlp_encoder_forward.1} parent=1 // pred_check
      _
    $region11: #{mlp_encoder_forward.1} parent=1 // pred_check_branch
      %23 = sbr.rel (0) target = $region13
    $region12: #{mlp_encoder_forward.1} parent=1 // pred_region
      %24 = dma.done [#allocation3], 6144
    $region13: #{mlp_encoder_forward.1} parent=1 // pred_fallthru
      _
    %v25 = vld [vmem:[%s0] sm:$0xff]
    %v26 = vld [vmem:[#allocation2] sm:$0xff]
    %v27 = vld [vmem:[#allocation2 + $0x8] sm:$0xff]
    %v28 = vld [vmem:[#allocation2 + $0x10] sm:$0xff]
    %v29 = vld [vmem:[#allocation2 + $0x18] sm:$0xff]
    %v30 = vld [vmem:[#allocation2 + $0x20] sm:$0xff]
    %v31 = vld [vmem:[#allocation2 + $0x28] sm:$0xff]
    %v32 = vld [vmem:[#allocation2 + $0x30] sm:$0xff]
    %v33 = vld [vmem:[#allocation2 + $0x38] sm:$0xff]
    %v34 = vld [vmem:[#allocation2 + $0x40] sm:$0xff]
    %v35 = vld [vmem:[#allocation2 + $0x48] sm:$0xff]
    %v36 = vld [vmem:[#allocation2 + $0x50] sm:$0xff]
    %v37 = vld [vmem:[#allocation2 + $0x58] sm:$0xff]
    %v38 = vld [vmem:[#allocation2 + $0x60] sm:$0xff]
    %v39 = vld [vmem:[#allocation2 + $0x68] sm:$0xff]
    %v40 = vld [vmem:[#allocation2 + $0x70] sm:$0xff]
    %v41 = vld [vmem:[#allocation2 + $0x78] sm:$0xff]
    %42 = vmatprep.subr.mxu0 0.0
    %43 = vmatpush1.msra.mxu0 %v41
    %44 = vmatprep.subr.mxu0 0.0
    %45 = vmatpush1.msra.mxu0 %v40
    %46 = vmatprep.subr.mxu0 0.0
    %47 = vmatpush1.msra.mxu0 %v39
    %48 = vmatprep.subr.mxu0 0.0
    %49 = vmatpush1.msra.mxu0 %v38
    %50 = vmatprep.subr.mxu0 0.0
    %51 = vmatpush1.msra.mxu0 %v37
    %52 = vmatprep.subr.mxu0 0.0
    %53 = vmatpush1.msra.mxu0 %v36
    %54 = vmatprep.subr.mxu0 0.0
    %55 = vmatpush1.msra.mxu0 %v35
    %56 = vmatprep.subr.mxu0 0.0
    %57 = vmatpush1.msra.mxu0 %v34
    %58 = vmatprep.subr.mxu0 0.0
    %59 = vmatpush1.msra.mxu0 %v33
    %60 = vmatprep.subr.mxu0 0.0
    %61 = vmatpush1.msra.mxu0 %v32
    %62 = vmatprep.subr.mxu0 0.0
    %63 = vmatpush1.msra.mxu0 %v31
    %64 = vmatprep.subr.mxu0 0.0
    %65 = vmatpush1.msra.mxu0 %v30
    %66 = vmatprep.subr.mxu0 0.0
    %67 = vmatpush1.msra.mxu0 %v29
    %68 = vmatprep.subr.mxu0 0.0
    %69 = vmatpush1.msra.mxu0 %v28
    %70 = vmatprep.subr.mxu0 0.0
    %71 = vmatpush1.msra.mxu0 %v27
    %72 = vmatprep.subr.mxu0 0.0
    %73 = vmatpush1.msra.mxu0 %v26
    %74 = vmatprep.subr.mxu0 0.0
    %75 = vmatpush2.msra.mxu0 0.0
    %76 = vmatprep.subr.mxu0 0.0
    %77 = vmatpush2.msra.mxu0 0.0
    %78 = vmatprep.subr.mxu0 0.0
    %79 = vmatpush2.msra.mxu0 0.0
    %80 = vmatprep.subr.mxu0 0.0
    %81 = vmatpush2.msra.mxu0 0.0
    %82 = vmatprep.subr.mxu0 0.0
    %83 = vmatpush2.msra.mxu0 0.0
    %84 = vmatprep.subr.mxu0 0.0
    %85 = vmatpush2.msra.mxu0 0.0
    %86 = vmatprep.subr.mxu0 0.0
    %87 = vmatpush2.msra.mxu0 0.0
    %88 = vmatprep.subr.mxu0 0.0
    %89 = vmatpush2.msra.mxu0 0.0
    %90 = vmatprep.subr.mxu0 0.0
    %91 = vmatpush2.msra.mxu0 0.0
    %92 = vmatprep.subr.mxu0 0.0
    %93 = vmatpush2.msra.mxu0 0.0
    %94 = vmatprep.subr.mxu0 0.0
    %95 = vmatpush2.msra.mxu0 0.0
    %96 = vmatprep.subr.mxu0 0.0
    %97 = vmatpush2.msra.mxu0 0.0
    %98 = vmatprep.subr.mxu0 0.0
    %99 = vmatpush2.msra.mxu0 0.0
    %100 = vmatprep.subr.mxu0 0.0
    %101 = vmatpush2.msra.mxu0 0.0
    %102 = vmatprep.subr.mxu0 0.0
    %103 = vmatpush2.msra.mxu0 0.0
    %104 = vmatprep.subr.mxu0 0.0
    %105 = vmatpush2.msra.mxu0 0.0
    %106 = vmatprep.mubr.f32.mxu0 0.0
    %107 = vmatmul.mubr.f32.gmra.mxu0 %v25
    %v108 = vpop.f32.mrf.mxu0
    %v109 = vadd.f32 0.0, %v108
    %v110 = vpop.f32.mrf.mxu0
    %111 = vdwg.mxu0
    %v112 = vmax.f32 %v109, 0.0
    %s113 = scalar_lea.vmem [#allocation2], 128
    %v114 = vld [vmem:[%s113] sm:$0xff]
    %v115 = vld [vmem:[%s113 + $0x8] sm:$0xff]
    %v116 = vld [vmem:[%s113 + $0x10] sm:$0xff]
    %v117 = vld [vmem:[%s113 + $0x18] sm:$0xff]
    %v118 = vld [vmem:[%s113 + $0x20] sm:$0xff]
    %v119 = vld [vmem:[%s113 + $0x28] sm:$0xff]
    %v120 = vld [vmem:[%s113 + $0x30] sm:$0xff]
    %v121 = vld [vmem:[%s113 + $0x38] sm:$0xff]
    %v122 = vld [vmem:[%s113 + $0x40] sm:$0xff]
    %v123 = vld [vmem:[%s113 + $0x48] sm:$0xff]
    %v124 = vld [vmem:[%s113 + $0x50] sm:$0xff]
    %v125 = vld [vmem:[%s113 + $0x58] sm:$0xff]
    %v126 = vld [vmem:[%s113 + $0x60] sm:$0xff]
    %v127 = vld [vmem:[%s113 + $0x68] sm:$0xff]
    %v128 = vld [vmem:[%s113 + $0x70] sm:$0xff]
    %v129 = vld [vmem:[%s113 + $0x78] sm:$0xff]
    %130 = vmatprep.subr.mxu0 0.0
    %131 = vmatpush1.msra.mxu0 %v129
    %132 = vmatprep.subr.mxu0 0.0
    %133 = vmatpush1.msra.mxu0 %v128
    %134 = vmatprep.subr.mxu0 0.0
    %135 = vmatpush1.msra.mxu0 %v127
    %136 = vmatprep.subr.mxu0 0.0
    %137 = vmatpush1.msra.mxu0 %v126
    %138 = vmatprep.subr.mxu0 0.0
    %139 = vmatpush1.msra.mxu0 %v125
    %140 = vmatprep.subr.mxu0 0.0
    %141 = vmatpush1.msra.mxu0 %v124
    %142 = vmatprep.subr.mxu0 0.0
    %143 = vmatpush1.msra.mxu0 %v123
    %144 = vmatprep.subr.mxu0 0.0
    %145 = vmatpush1.msra.mxu0 %v122
    %146 = vmatprep.subr.mxu0 0.0
    %147 = vmatpush1.msra.mxu0 %v121
    %148 = vmatprep.subr.mxu0 0.0
    %149 = vmatpush1.msra.mxu0 %v120
    %150 = vmatprep.subr.mxu0 0.0
    %151 = vmatpush1.msra.mxu0 %v119
    %152 = vmatprep.subr.mxu0 0.0
    %153 = vmatpush1.msra.mxu0 %v118
    %154 = vmatprep.subr.mxu0 0.0
    %155 = vmatpush1.msra.mxu0 %v117
    %156 = vmatprep.subr.mxu0 0.0
    %157 = vmatpush1.msra.mxu0 %v116
    %158 = vmatprep.subr.mxu0 0.0
    %159 = vmatpush1.msra.mxu0 %v115
    %160 = vmatprep.subr.mxu0 0.0
    %161 = vmatpush1.msra.mxu0 %v114
    %162 = vmatprep.subr.mxu0 0.0
    %163 = vmatpush2.msra.mxu0 0.0
    %164 = vmatprep.subr.mxu0 0.0
    %165 = vmatpush2.msra.mxu0 0.0
    %166 = vmatprep.subr.mxu0 0.0
    %167 = vmatpush2.msra.mxu0 0.0
    %168 = vmatprep.subr.mxu0 0.0
    %169 = vmatpush2.msra.mxu0 0.0
    %170 = vmatprep.subr.mxu0 0.0
    %171 = vmatpush2.msra.mxu0 0.0
    %172 = vmatprep.subr.mxu0 0.0
    %173 = vmatpush2.msra.mxu0 0.0
    %174 = vmatprep.subr.mxu0 0.0
    %175 = vmatpush2.msra.mxu0 0.0
    %176 = vmatprep.subr.mxu0 0.0
    %177 = vmatpush2.msra.mxu0 0.0
    %178 = vmatprep.subr.mxu0 0.0
    %179 = vmatpush2.msra.mxu0 0.0
    %180 = vmatprep.subr.mxu0 0.0
    %181 = vmatpush2.msra.mxu0 0.0
    %182 = vmatprep.subr.mxu0 0.0
    %183 = vmatpush2.msra.mxu0 0.0
    %184 = vmatprep.subr.mxu0 0.0
    %185 = vmatpush2.msra.mxu0 0.0
    %186 = vmatprep.subr.mxu0 0.0
    %187 = vmatpush2.msra.mxu0 0.0
    %188 = vmatprep.subr.mxu0 0.0
    %189 = vmatpush2.msra.mxu0 0.0
    %190 = vmatprep.subr.mxu0 0.0
    %191 = vmatpush2.msra.mxu0 0.0
    %192 = vmatprep.subr.mxu0 0.0
    %193 = vmatpush2.msra.mxu0 0.0
    %194 = vmatprep.mubr.f32.mxu0 0.0
    %195 = vmatmul.mubr.f32.gmra.mxu0 %v112
    %v196 = vpop.f32.mrf.mxu0
    %v197 = vadd.f32 0.0, %v196
    %v198 = vpop.f32.mrf.mxu0
    %199 = vdwg.mxu0
    %v200 = vmax.f32 %v197, 0.0
    %s201 = scalar_lea.vmem [#allocation2], 256
    %v202 = vld [vmem:[%s201] sm:$0xff]
    %v203 = vld [vmem:[%s201 + $0x8] sm:$0xff]
    %v204 = vld [vmem:[%s201 + $0x10] sm:$0xff]
    %v205 = vld [vmem:[%s201 + $0x18] sm:$0xff]
    %v206 = vld [vmem:[%s201 + $0x20] sm:$0xff]
    %v207 = vld [vmem:[%s201 + $0x28] sm:$0xff]
    %v208 = vld [vmem:[%s201 + $0x30] sm:$0xff]
    %v209 = vld [vmem:[%s201 + $0x38] sm:$0xff]
    %v210 = vld [vmem:[%s201 + $0x40] sm:$0xff]
    %v211 = vld [vmem:[%s201 + $0x48] sm:$0xff]
    %v212 = vld [vmem:[%s201 + $0x50] sm:$0xff]
    %v213 = vld [vmem:[%s201 + $0x58] sm:$0xff]
    %v214 = vld [vmem:[%s201 + $0x60] sm:$0xff]
    %v215 = vld [vmem:[%s201 + $0x68] sm:$0xff]
    %v216 = vld [vmem:[%s201 + $0x70] sm:$0xff]
    %v217 = vld [vmem:[%s201 + $0x78] sm:$0xff]
    %218 = vmatprep.subr.mxu0 0.0
    %219 = vmatpush1.msra.mxu0 %v217
    %220 = vmatprep.subr.mxu0 0.0
    %221 = vmatpush1.msra.mxu0 %v216
    %222 = vmatprep.subr.mxu0 0.0
    %223 = vmatpush1.msra.mxu0 %v215
    %224 = vmatprep.subr.mxu0 0.0
    %225 = vmatpush1.msra.mxu0 %v214
    %226 = vmatprep.subr.mxu0 0.0
    %227 = vmatpush1.msra.mxu0 %v213
    %228 = vmatprep.subr.mxu0 0.0
    %229 = vmatpush1.msra.mxu0 %v212
    %230 = vmatprep.subr.mxu0 0.0
    %231 = vmatpush1.msra.mxu0 %v211
    %232 = vmatprep.subr.mxu0 0.0
    %233 = vmatpush1.msra.mxu0 %v210
    %234 = vmatprep.subr.mxu0 0.0
    %235 = vmatpush1.msra.mxu0 %v209
    %236 = vmatprep.subr.mxu0 0.0
    %237 = vmatpush1.msra.mxu0 %v208
    %238 = vmatprep.subr.mxu0 0.0
    %239 = vmatpush1.msra.mxu0 %v207
    %240 = vmatprep.subr.mxu0 0.0
    %241 = vmatpush1.msra.mxu0 %v206
    %242 = vmatprep.subr.mxu0 0.0
    %243 = vmatpush1.msra.mxu0 %v205
    %244 = vmatprep.subr.mxu0 0.0
    %245 = vmatpush1.msra.mxu0 %v204
    %246 = vmatprep.subr.mxu0 0.0
    %247 = vmatpush1.msra.mxu0 %v203
    %248 = vmatprep.subr.mxu0 0.0
    %249 = vmatpush1.msra.mxu0 %v202
    %250 = vmatprep.subr.mxu0 0.0
    %251 = vmatpush2.msra.mxu0 0.0
    %252 = vmatprep.subr.mxu0 0.0
    %253 = vmatpush2.msra.mxu0 0.0
    %254 = vmatprep.subr.mxu0 0.0
    %255 = vmatpush2.msra.mxu0 0.0
    %256 = vmatprep.subr.mxu0 0.0
    %257 = vmatpush2.msra.mxu0 0.0
    %258 = vmatprep.subr.mxu0 0.0
    %259 = vmatpush2.msra.mxu0 0.0
    %260 = vmatprep.subr.mxu0 0.0
    %261 = vmatpush2.msra.mxu0 0.0
    %262 = vmatprep.subr.mxu0 0.0
    %263 = vmatpush2.msra.mxu0 0.0
    %264 = vmatprep.subr.mxu0 0.0
    %265 = vmatpush2.msra.mxu0 0.0
    %266 = vmatprep.subr.mxu0 0.0
    %267 = vmatpush2.msra.mxu0 0.0
    %268 = vmatprep.subr.mxu0 0.0
    %269 = vmatpush2.msra.mxu0 0.0
    %270 = vmatprep.subr.mxu0 0.0
    %271 = vmatpush2.msra.mxu0 0.0
    %272 = vmatprep.subr.mxu0 0.0
    %273 = vmatpush2.msra.mxu0 0.0
    %274 = vmatprep.subr.mxu0 0.0
    %275 = vmatpush2.msra.mxu0 0.0
    %276 = vmatprep.subr.mxu0 0.0
    %277 = vmatpush2.msra.mxu0 0.0
    %278 = vmatprep.subr.mxu0 0.0
    %279 = vmatpush2.msra.mxu0 0.0
    %280 = vmatprep.subr.mxu0 0.0
    %281 = vmatpush2.msra.mxu0 0.0
    %282 = vmatprep.mubr.f32.mxu0 0.0
    %283 = vmatmul.mubr.f32.gmra.mxu0 %v200
    %v284 = vpop.f32.mrf.mxu0
    %v285 = vadd.f32 0.0, %v284
    %v286 = vpop.f32.mrf.mxu0
    %287 = vdwg.mxu0
    %288 = vst [vmem:[%s2] sm:$0xff] %v285
    // Predicated region
    $region14: #{mlp_encoder_forward.1} parent=1 // pred_check
      _
    $region15: #{mlp_encoder_forward.1} parent=1 // pred_check_branch
      %290 = sbr.rel (0) target = $region17
    $region16: #{mlp_encoder_forward.1} parent=1 // pred_region
      _
    $region17: #{mlp_encoder_forward.1} parent=1 // pred_fallthru
      _
    // Predicated region
    $region18: #{mlp_encoder_forward.1} parent=1 // pred_check
      _
    $region19: #{mlp_encoder_forward.1} parent=1 // pred_check_branch
      %292 = sbr.rel (0) target = $region21
    $region20: #{mlp_encoder_forward.1} parent=1 // pred_region
      _
    $region21: #{mlp_encoder_forward.1} parent=1 // pred_fallthru
      _
    %293 = vsyncpa [#allocation3], 1

</llo_original>
